<compile_context>
chip_gen: v7x
topology: tpu7x:2x2x1
jax: 0.10.0
libtpu: 0.0.40
codegen_flags: <defaults>
</compile_context>

<pallas_src>
import functools

import numpy as np
import jax
import jax.numpy as jnp
from jax import lax
from jax.experimental import pallas as pl
from jax.experimental.pallas import tpu as pltpu


_BLOCK_BUDGET = 2 * 1024 * 1024        # target bytes per pipelined block
_VMEM_LIMIT = 32 * 1024 * 1024         # explicit scoped-VMEM limit (OK on v5e..v7x)


# ----------------------------------------------------------------------------- helpers
def _divisors(n):
    small, large = [], []
    i = 1
    while i * i <= n:
        if n % i == 0:
            small.append(i)
            large.append(n // i)
        i += 1
    return sorted(set(small + large))


def _pick_tile(total, unit_bytes, budget_bytes, multiple=1):
    """Largest divisor of `total` that is a multiple of `multiple` (or `total` itself)
    and keeps `tile * unit_bytes` within budget; falls back to the smallest candidate."""
    cands = [d for d in _divisors(total) if d % multiple == 0] or [total]
    fitting = [d for d in cands if d * unit_bytes <= budget_bytes]
    return max(fitting) if fitting else min(cands)


def _flat2d_view(x):
    """Lane-dense 2-D view of the contiguous NCDHW tensor (pure reshape)."""
    N, C, D, H, W = x.shape
    isz = x.dtype.itemsize
    if H * W * 8 * isz <= _BLOCK_BUDGET:
        return x.reshape(N * C * D, H * W)
    return x.reshape(N * C * D * H, W)   # keep row tiles within budget for huge H*W


def _reverse_slices(v, axis):
    """Slow slice+concat reversal; only used if lax.rev fails to lower."""
    axis = axis % v.ndim
    n = v.shape[axis]
    if n <= 1:
        return v
    parts = [lax.slice_in_dim(v, i, i + 1, axis=axis) for i in range(n - 1, -1, -1)]
    return jnp.concatenate(parts, axis=axis)


def _rev_tail(v, fast_rev):
    """Reverse every non-leading axis of `v` (single lax.rev; O(n) fallback)."""
    dims = tuple(range(1, v.ndim))
    if not dims:
        return v
    if fast_rev:
        return lax.rev(v, dims)
    for d in dims:
        v = _reverse_slices(v, d)
    return v


# ----------------------------------------------------------------------------- kernels
def _std_offset_kernel(eps, n_elems, shift_ref, x_ref, off_ref, acc_ref, acc2_ref):
    """Shifted one-pass [sum, sum_sq] with f32 vector accumulators.

    Per-step work is pure VPU adds (hides under the DMA); the XLU tree reduce and the
    std finishing math (var -> std -> eps*std) run only at the last grid step, so the
    kernel emits the final f32 offset directly (no host-level finishing micro-ops).
    """
    g = pl.program_id(0)

    @pl.when(g == 0)
    def _():
        acc_ref[...] = jnp.zeros_like(acc_ref)
        acc2_ref[...] = jnp.zeros_like(acc2_ref)

    d = x_ref[...].astype(jnp.float32) - shift_ref[0]
    acc_ref[...] += d
    acc2_ref[...] += d * d

    @pl.when(g == pl.num_programs(0) - 1)
    def _():
        total = jnp.sum(acc_ref[...])
        total_sq = jnp.sum(acc2_ref[...])
        var = (total_sq - total * total / n_elems) / (n_elems - 1.0)
        off_ref[0] = jnp.sqrt(jnp.maximum(var, 0.0)) * eps


def _noise_kernel(off_ref, x_ref, o_ref):
    """Lane-dense streaming add of the noise offset (add in f32, cast at the end)."""
    o_ref[...] = (x_ref[...].astype(jnp.float32) + off_ref[0]).astype(o_ref.dtype)


def _aug_kernel(src_axis, dst_axis, needs_swap, do_flip, has_noise, fast_rev, *refs):
    """Streaming transpose/flip(+noise) on one block.

    Squeezes the size-1 gridded spatial axis out of the input block, optionally reverses
    the in-block spatial axes (single lax.rev; the gridded axis is reversed by the
    index_map), optionally swaps the two minor dims (lane<->sublane transpose), adds the
    noise offset in f32, and stores into the output block.
    """
    if has_noise:
        off_ref, x_ref, o_ref = refs
    else:
        x_ref, o_ref = refs
        off_ref = None

    nd = len(x_ref.shape)
    in_idx = tuple(0 if a == src_axis else slice(None) for a in range(nd))
    v = x_ref[in_idx]

    if do_flip:
        v = _rev_tail(v, fast_rev)
    if needs_swap:
        v = jnp.swapaxes(v, -1, -2)
    if has_noise:
        v = (v.astype(jnp.float32) + off_ref[0]).astype(o_ref.dtype)

    nd_o = len(o_ref.shape)
    out_idx = tuple(0 if a == dst_axis else slice(None) for a in range(nd_o))
    o_ref[out_idx] = v


# ----------------------------------------------------------------------------- wrappers
def _noise_offset(x, eps):
    """offset = eps * unbiased_std(x), as a (1,) f32 array."""
    x2 = _flat2d_view(x)
    R, L = x2.shape
    isz = x.dtype.itemsize
    tile_r = _pick_tile(R, L * isz, _BLOCK_BUDGET, multiple=8)

    # First element as a shift => the one-pass variance is evaluated on deviations,
    # avoiding catastrophic cancellation when |mean| >> std.
    shift = lax.slice(x2, (0, 0), (1, 1)).reshape(1).astype(jnp.float32)

    kernel = functools.partial(_std_offset_kernel, float(eps), float(x.size))
    # TODO(synk): on v7x emit per-core partial sums (grid "parallel") to use both
    # TensorCores for this reduction instead of a single sequential accumulator.
    return pl.pallas_call(
        kernel,
        out_shape=jax.ShapeDtypeStruct((1,), jnp.float32),
        grid=(R // tile_r,),
        in_specs=[pl.BlockSpec(memory_space=pltpu.MemorySpace.SMEM),
                  pl.BlockSpec((tile_r, L), lambda g: (g, 0))],
        out_specs=pl.BlockSpec(memory_space=pltpu.MemorySpace.SMEM),
        scratch_shapes=[pltpu.VMEM((tile_r, L), jnp.float32),
                        pltpu.VMEM((tile_r, L), jnp.float32)],
        compiler_params=pltpu.CompilerParams(
            dimension_semantics=("arbitrary",),
            vmem_limit_bytes=_VMEM_LIMIT),
    )(shift, x2)


def _apply_augmentation(x, apply_noise, eps, spatial_perm, apply_flip):
    """Apply (noise, spatial transpose, flip) -- all decisions are trace-time Python."""
    N, C, D, H, W = x.shape
    NC = N * C
    s = (D, H, W)
    perm = tuple(spatial_perm)
    identity = perm == (0, 1, 2)
    isz = x.dtype.itemsize

    if not apply_noise and identity and not apply_flip:
        return x  # nothing to do (matches torch returning x unchanged)

    out_spatial = tuple(s[p] for p in perm)

    noise_args, noise_specs = [], []
    if apply_noise:
        noise_args = [_noise_offset(x, eps)]
        noise_specs = [pl.BlockSpec(memory_space=pltpu.MemorySpace.SMEM)]

    if identity and not apply_flip:
        # Noise-only: lane-dense 2-D stream, rows tiled in multiples of 8; output
        # aliased onto the (reshaped) input -- same-block read-then-write is safe.
        x2 = _flat2d_view(x)
        R, L = x2.shape
        tile_r = _pick_tile(R, L * isz, _BLOCK_BUDGET, multiple=8)
        out = pl.pallas_call(
            _noise_kernel,
            out_shape=jax.ShapeDtypeStruct((R, L), x.dtype),
            grid=(R // tile_r,),
            in_specs=noise_specs + [pl.BlockSpec((tile_r, L), lambda g: (g, 0))],
            out_specs=pl.BlockSpec((tile_r, L), lambda g: (g, 0)),
            input_output_aliases={1: 0},
            compiler_params=pltpu.CompilerParams(
                dimension_semantics=("parallel",),
                vmem_limit_bytes=_VMEM_LIMIT),
        )(*noise_args, x2)
        return out.reshape(x.shape)

    if identity:
        # Identity perm + flip: flip(D,H,W) == reverse D via the index_map and reverse
        # the fused H*W lane axis in-block -> lane-dense input AND output blocks.
        HW = H * W
        xin = x.reshape(NC, D, HW)
        per_nc = 2 * HW * isz
        tile_nc = _pick_tile(NC, per_nc, 2 * _BLOCK_BUDGET, multiple=1)
        grid = (NC // tile_nc, D)

        def in_index_map(i, g, _n=D):
            return (i, _n - 1 - g, 0)

        def out_index_map(i, g):
            return (i, g, 0)

        in_spec = pl.BlockSpec((tile_nc, 1, HW), in_index_map)
        out_spec = pl.BlockSpec((tile_nc, 1, HW), out_index_map)
        out_shape = jax.ShapeDtypeStruct((NC, D, HW), x.dtype)
        src_axis, dst_axis, needs_swap = 1, 1, False
    else:
        # General path: 4-D pure-reshape views on both sides.  Grid over an output
        # spatial axis t* whose source input axis a* is not W, so both blocks keep a
        # full minor (lane) dim; the permutation and the flip of the gridded axis are
        # folded entirely into the index_maps (no data-movement cost).
        t_star = 0 if perm[0] != 2 else 1
        a_star = perm[t_star]
        in_block_sp = [D, H, W]
        in_block_sp[a_star] = 1
        out_block_sp = list(out_spatial)
        out_block_sp[t_star] = 1

        per_nc = (int(np.prod(in_block_sp)) + int(np.prod(out_block_sp))) * isz
        tile_nc = _pick_tile(NC, per_nc, 2 * _BLOCK_BUDGET, multiple=1)
        grid = (NC // tile_nc, s[a_star])
        xin = x.reshape(NC, D, H, W)

        def in_index_map(i, g, _a=a_star, _n=s[a_star], _flip=apply_flip):
            idx = [i, 0, 0, 0]
            idx[_a + 1] = (_n - 1 - g) if _flip else g
            return tuple(idx)

        def out_index_map(i, g, _t=t_star):
            idx = [i, 0, 0, 0]
            idx[_t + 1] = g
            return tuple(idx)

        in_spec = pl.BlockSpec((tile_nc,) + tuple(in_block_sp), in_index_map)
        out_spec = pl.BlockSpec((tile_nc,) + tuple(out_block_sp), out_index_map)
        out_shape = jax.ShapeDtypeStruct((NC,) + out_spatial, x.dtype)
        src_axis, dst_axis = a_star + 1, t_star + 1
        needs_swap = perm[2] != 2  # output minor axis fed by a non-W input axis

    def run(fast_rev):
        kernel = functools.partial(
            _aug_kernel, src_axis, dst_axis, needs_swap, apply_flip, apply_noise, fast_rev)
        return pl.pallas_call(
            kernel,
            out_shape=out_shape,
            grid=grid,
            in_specs=noise_specs + [in_spec],
            out_specs=out_spec,
            compiler_params=pltpu.CompilerParams(
                dimension_semantics=("parallel", "parallel"),
                vmem_limit_bytes=_VMEM_LIMIT),
        )(*noise_args, xin)

    if apply_flip:
        try:
            out = run(True)
        except Exception:
            # Fallback only if lax.rev fails to lower on this Mosaic version.
            out = run(False)
    else:
        out = run(True)

    return out.reshape((N, C) + out_spatial)


def augmentation_forward(x, training=True):
    """Pallas implementation of Augmentation.forward for a 5-D NCDHW input.

    Host-side np.random branching mirrors the torch module's RNG stream and is resolved
    at trace time (each branch combination corresponds to a different tiny kernel).
    """
    if not training:
        return x, {}

    num_dims = x.ndim  # 5

    apply_noise = False
    eps = 0.0
    if np.random.rand() < 0.25:
        apply_noise = True
        eps = float((np.random.rand() - 1.0) * 2.0 * 0.001)

    spatial_perm = [0, 1, 2]
    if np.random.rand() < 0.25:
        dim0 = int(np.random.randint(2, num_dims))
        dim1 = int(np.random.randint(2, num_dims))
        spatial_perm[dim0 - 2], spatial_perm[dim1 - 2] = (
            spatial_perm[dim1 - 2],
            spatial_perm[dim0 - 2],
        )
    spatial_perm = tuple(spatial_perm)

    apply_flip = False
    if np.random.rand() < 0.25:
        _ = np.random.randint(2, num_dims + 1)  # drawn & ignored, as in the torch code
        _ = np.random.randint(2, num_dims + 1)
        apply_flip = True

    out = _apply_augmentation(x, apply_noise, eps, spatial_perm, apply_flip)
    info = dict(
        apply_noise=apply_noise, eps=eps, spatial_perm=spatial_perm, apply_flip=apply_flip
    )
    return out, info


# ----------------------------------------------------------------------------- test
def _reference(x, apply_noise, eps, spatial_perm, apply_flip):
    ref = x.astype(jnp.float32)
    if apply_noise:
        ref = ref + jnp.std(ref, ddof=1) * eps
    full_perm = (0, 1) + tuple(p + 2 for p in spatial_perm)
    ref = jnp.transpose(ref, full_perm)
    if apply_flip:
        ref = jnp.flip(ref, axis=(2, 3, 4))
    return ref.astype(x.dtype)


if __name__ == "__main__":
    key = jax.random.PRNGKey(0)
    x = jax.random.normal(key, (2, 4, 8, 8, 8), dtype=jnp.float32)  # N,C,D,H,W

    # Cover every kernel path: early-return, lane-dense noise-only (aliased), fused-lane
    # flip (+noise), index_map-only transpose (D<->H), and in-kernel minor-swap
    # transposes (H<->W, D<->W) with and without flip/noise.
    cases = [
        (False, (0, 1, 2), False),
        (True, (0, 1, 2), False),
        (False, (0, 1, 2), True),
        (True, (0, 1, 2), True),
        (False, (1, 0, 2), False),
        (True, (1, 0, 2), True),
        (False, (0, 2, 1), True),
        (True, (2, 1, 0), False),
    ]
    for apply_noise, perm, apply_flip in cases:
        eps = -1.2345e-3 if apply_noise else 0.0
        out = jax.block_until_ready(_apply_augmentation(x, apply_noise, eps, perm, apply_flip))
        ref = _reference(x, apply_noise, eps, perm, apply_flip)
        assert out.shape == ref.shape, (out.shape, ref.shape)
        np.testing.assert_allclose(np.asarray(out), np.asarray(ref), rtol=1e-5, atol=1e-5)

    # bf16 input: offset is added in f32 and cast once at the end.
    x_bf16 = x.astype(jnp.bfloat16)
    out_bf = jax.block_until_ready(
        _apply_augmentation(x_bf16, True, -1.2345e-3, (0, 1, 2), False))
    ref_bf = _reference(x_bf16, True, -1.2345e-3, (0, 1, 2), False)
    np.testing.assert_allclose(
        np.asarray(out_bf).astype(np.float32),
        np.asarray(ref_bf).astype(np.float32),
        rtol=2e-2, atol=2e-2)

    # Full module behaviour with the host-side RNG stream.
    np.random.seed(5)
    out, info = augmentation_forward(x, training=True)
    out = jax.block_until_ready(out)
    ref = _reference(x, info["apply_noise"], info["eps"], info["spatial_perm"], info["apply_flip"])
    assert out.shape == ref.shape
    np.testing.assert_allclose(np.asarray(out), np.asarray(ref), rtol=1e-5, atol=1e-5)

    # Eval mode is identity.
    out_eval, _ = augmentation_forward(x, training=False)
    assert out_eval is x

    print("KERNEL_OK")
</pallas_src>

<mosaic_0001>
module attributes {stable_mosaic.version = 11 : i64} {
  func.func @_std_offset_kernel(%arg0: i32, %arg1: memref<1xf32, #tpu.memory_space<smem>>, %arg2: memref<64x64xf32, #tpu.memory_space<vmem>>, %arg3: memref<1xf32, #tpu.memory_space<smem>>, %arg4: memref<64x64xf32, #tpu.memory_space<vmem>>, %arg5: memref<64x64xf32, #tpu.memory_space<vmem>>) attributes {dimension_semantics = [#tpu.dimension_semantics<arbitrary>], iteration_bounds = array<i64: 1>, scalar_prefetch = 0 : i64, scratch_operands = 2 : i64, tpu.core_type = #tpu.core_type<tc>, window_params = [{transform_indices = @transform_0, window_bounds = array<i64: 1>}, {transform_indices = @transform_1, window_bounds = array<i64: 64, 64>}, {transform_indices = @transform_2, window_bounds = array<i64: 1>}]} {
    %c0_i32 = arith.constant 0 : i32
    %0 = arith.cmpi eq, %arg0, %c0_i32 : i32
    %1 = arith.extui %0 : i1 to i32
    %c0_i32_0 = arith.constant 0 : i32
    %2 = arith.cmpi ne, %1, %c0_i32_0 : i32
    scf.if %2 {
      %cst = arith.constant 0.000000e+00 : f32
      %17 = vector.broadcast %cst : f32 to vector<64x64xf32>
      %c0_13 = arith.constant 0 : index
      %c0_14 = arith.constant 0 : index
      %18 = vector.load %arg4[%c0_13, %c0_14] : memref<64x64xf32, #tpu.memory_space<vmem>>, vector<64x64xf32>
      tpu.vector_store %arg4[%c0_13, %c0_14], %17 {strides = array<i32>} : memref<64x64xf32, #tpu.memory_space<vmem>>, vector<64x64xf32>,
      %cst_15 = arith.constant 0.000000e+00 : f32
      %19 = vector.broadcast %cst_15 : f32 to vector<64x64xf32>
      %c0_16 = arith.constant 0 : index
      %c0_17 = arith.constant 0 : index
      %20 = vector.load %arg5[%c0_16, %c0_17] : memref<64x64xf32, #tpu.memory_space<vmem>>, vector<64x64xf32>
      tpu.vector_store %arg5[%c0_16, %c0_17], %19 {strides = array<i32>} : memref<64x64xf32, #tpu.memory_space<vmem>>, vector<64x64xf32>,
    } else {
    }
    %c0 = arith.constant 0 : index
    %c0_1 = arith.constant 0 : index
    %3 = vector.load %arg2[%c0, %c0_1] : memref<64x64xf32, #tpu.memory_space<vmem>>, vector<64x64xf32>
    %c0_2 = arith.constant 0 : index
    %4 = memref.load %arg1[%c0_2] : memref<1xf32, #tpu.memory_space<smem>>
    %5 = vector.broadcast %4 : f32 to vector<64x64xf32>
    %6 = arith.subf %3, %5 : vector<64x64xf32>
    %c0_3 = arith.constant 0 : index
    %c0_4 = arith.constant 0 : index
    %7 = vector.load %arg4[%c0_3, %c0_4] : memref<64x64xf32, #tpu.memory_space<vmem>>, vector<64x64xf32>
    %8 = arith.addf %7, %6 : vector<64x64xf32>
    %c0_5 = arith.constant 0 : index
    %c0_6 = arith.constant 0 : index
    %9 = vector.load %arg4[%c0_5, %c0_6] : memref<64x64xf32, #tpu.memory_space<vmem>>, vector<64x64xf32>
    tpu.vector_store %arg4[%c0_5, %c0_6], %8 {strides = array<i32>} : memref<64x64xf32, #tpu.memory_space<vmem>>, vector<64x64xf32>,
    %c0_7 = arith.constant 0 : index
    %c0_8 = arith.constant 0 : index
    %10 = vector.load %arg5[%c0_7, %c0_8] : memref<64x64xf32, #tpu.memory_space<vmem>>, vector<64x64xf32>
    %11 = arith.mulf %6, %6 : vector<64x64xf32>
    %12 = arith.addf %10, %11 : vector<64x64xf32>
    %c0_9 = arith.constant 0 : index
    %c0_10 = arith.constant 0 : index
    %13 = vector.load %arg5[%c0_9, %c0_10] : memref<64x64xf32, #tpu.memory_space<vmem>>, vector<64x64xf32>
    tpu.vector_store %arg5[%c0_9, %c0_10], %12 {strides = array<i32>} : memref<64x64xf32, #tpu.memory_space<vmem>>, vector<64x64xf32>,
    %c0_i32_11 = arith.constant 0 : i32
    %14 = arith.cmpi eq, %arg0, %c0_i32_11 : i32
    %15 = arith.extui %14 : i1 to i32
    %c0_i32_12 = arith.constant 0 : i32
    %16 = arith.cmpi ne, %15, %c0_i32_12 : i32
    scf.if %16 {
      %c0_13 = arith.constant 0 : index
      %c0_14 = arith.constant 0 : index
      %17 = vector.load %arg4[%c0_13, %c0_14] : memref<64x64xf32, #tpu.memory_space<vmem>>, vector<64x64xf32>
      %18 = vector.shape_cast %17 : vector<64x64xf32> to vector<1x64x64xf32>
      %cst = arith.constant dense<0.000000e+00> : vector<1xf32>
      %19 = vector.multi_reduction <add>, %18, %cst [1, 2] : vector<1x64x64xf32> to vector<1xf32>
      %20 = vector.shape_cast %19 : vector<1xf32> to vector<1x1x1xf32>
      %21 = vector.extract %20[0, 0, 0] : f32 from vector<1x1x1xf32>
      %c0_15 = arith.constant 0 : index
      %c0_16 = arith.constant 0 : index
      %22 = vector.load %arg5[%c0_15, %c0_16] : memref<64x64xf32, #tpu.memory_space<vmem>>, vector<64x64xf32>
      %23 = vector.shape_cast %22 : vector<64x64xf32> to vector<1x64x64xf32>
      %cst_17 = arith.constant dense<0.000000e+00> : vector<1xf32>
      %24 = vector.multi_reduction <add>, %23, %cst_17 [1, 2] : vector<1x64x64xf32> to vector<1xf32>
      %25 = vector.shape_cast %24 : vector<1xf32> to vector<1x1x1xf32>
      %26 = vector.extract %25[0, 0, 0] : f32 from vector<1x1x1xf32>
      %27 = arith.mulf %21, %21 : f32
      %cst_18 = arith.constant 4.096000e+03 : f32
      %28 = arith.divf %27, %cst_18 : f32
      %29 = arith.subf %26, %28 : f32
      %cst_19 = arith.constant 4.095000e+03 : f32
      %30 = arith.divf %29, %cst_19 : f32
      %cst_20 = arith.constant 0.000000e+00 : f32
      %31 = arith.maximumf %30, %cst_20 : f32
      %32 = math.sqrt %31 : f32
      %cst_21 = arith.constant -1.234500e-03 : f32
      %33 = arith.mulf %32, %cst_21 : f32
      %c0_22 = arith.constant 0 : index
      %34 = memref.load %arg3[%c0_22] : memref<1xf32, #tpu.memory_space<smem>>
      memref.store %33, %arg3[%c0_22] : memref<1xf32, #tpu.memory_space<smem>>
    } else {
    }
    return
  }
  func.func @transform_0(%arg0: i32) -> i32 {
    %c0_i32 = arith.constant 0 : i32
    %c0_i32_0 = arith.constant 0 : i32
    return %c0_i32 : i32
  }
  func.func @transform_1(%arg0: i32) -> (i32, i32) {
    %c0_i32 = arith.constant 0 : i32
    %c0_i32_0 = arith.constant 0 : i32
    return %arg0, %c0_i32 : i32, i32
  }
  func.func @transform_2(%arg0: i32) -> i32 {
    %c0_i32 = arith.constant 0 : i32
    %c0_i32_0 = arith.constant 0 : i32
    return %c0_i32 : i32
  }
}

</mosaic_0001>

<llo_original>
// kernel: tpu_custom_call.1
$region0: #{tpu_custom_call.1}
  #allocation0 [shape = 'u32[]', space=smem, size = 0x4, offset = 0x4, fixed_abs, tag = 'smem constant byte address 0x4 - core index']
  #allocation1 [shape = 'u32[144,128]{1,0:T(1,128)}', space=vmem, size = 0x12000, scoped, tag = 'internal scratch']
  #allocation2 [shape = 'f32[64,64]{1,0:T(8,128)}', space=vmem, size = 0x8000, scoped, tag = 'scratch operand']
  #allocation3 [shape = 'f32[64,64]{1,0:T(8,128)}', space=vmem, size = 0x8000, scoped, tag = 'scratch operand']
  #allocation4 [shape = 'f32[1]{0:T(128)S(6)}', space=smem, size = 0x200, scoped, tag = 'scoped memory for tpu_custom_call.1']
  %s0 = inlined_call_operand.<no memory space> [shape: f32[1], index: 0, kind: input, shape index: {}]
  %s1 = inlined_call_operand.hbm [shape: f32[64,64], index: 1, kind: input, shape index: {}]
  %s2 = inlined_call_operand.hbm [shape: f32[1], index: 2, kind: output, shape index: {}]
  %s3 = sld [smem:[#allocation0]]
  $region30: #{tpu_custom_call.1} parent=0
    _
  %s5 = ssub.s32 1, %s3
  %s6 = scalar_select 0, %s5, %s3
  %7 = sst [smem:[#allocation4]] %s0
  $region1: #{tpu_custom_call.1} parent=0
    #allocation5 [shape = 'u8[32768]{0}', space=vmem, size = 0x8000, scoped, tag = 'input window, operand 1, single buffered']
    #allocation6 [shape = 's32[1]{0}', space=sflag, size = 0x4, scoped, tag = 'scoped memory for tpu_custom_call.1']
    #allocation7 [shape = 's32[1]{0}', space=sflag, size = 0x4, scoped, tag = 'scoped memory for tpu_custom_call.1']
    #allocation8 [shape = 'u8[512]{0}', space=smem, size = 0x200, scoped, tag = 'output window, operand 0, single buffered']
    %8 = vsyncpa [#allocation6], 0
    %9 = vsyncpa [#allocation7], 0
    // Predicated region
    $region2: #{tpu_custom_call.1} parent=1 // pred_check
      _
    $region3: #{tpu_custom_call.1} parent=1 // pred_check_branch
      %11 = sbr.rel (0) target = $region5
    $region4: #{tpu_custom_call.1} parent=1 // pred_region
      _
    $region5: #{tpu_custom_call.1} parent=1 // pred_fallthru
      _
    // Predicated region
    $region6: #{tpu_custom_call.1} parent=1 // pred_check
      _
    $region7: #{tpu_custom_call.1} parent=1 // pred_check_branch
      %13 = sbr.rel (0) target = $region9
    $region8: #{tpu_custom_call.1} parent=1 // pred_region
      %s15 = ssub.s32 1024, 1024
      %16 = vsyncadd [#allocation6], %s15
      %s17 = sshll.u32 [#allocation5], 4
      %s18 = int_to_ptr.vmem [resolvable:$true] %s17
      %23 = dma.hbm_to_vmem [thread:$0]  %s1, 1024, %s18, [#allocation6], 128, 128, 8
    $region9: #{tpu_custom_call.1} parent=1 // pred_fallthru
      _
    // Predicated region
    $region10: #{tpu_custom_call.1} parent=1 // pred_check
      _
    $region11: #{tpu_custom_call.1} parent=1 // pred_check_branch
      %25 = sbr.rel (0) target = $region13
    $region12: #{tpu_custom_call.1} parent=1 // pred_region
      %26 = dma.done [#allocation6], 1024
    $region13: #{tpu_custom_call.1} parent=1 // pred_fallthru
      _
    %p27 = scmp.eq.s32.totalorder 0, 0
    // Predicated region
    $region14: #{tpu_custom_call.1} parent=1 // pred_check
      %p28 = pneg %p27
    $region15: #{tpu_custom_call.1} parent=1 // pred_check_branch
      %30 = sbr.rel (%p28) target = $region17
    $region16: #{tpu_custom_call.1} parent=1 // pred_region
      %vm31 = vcmask 523264
      %32 = vst.msk [vmem:[#allocation2] sm:$0xff] %vm31, 0.0
      %33 = vst.msk [vmem:[#allocation2 + $0x8] sm:$0xff] %vm31, 0.0
      %34 = vst.msk [vmem:[#allocation2 + $0x10] sm:$0xff] %vm31, 0.0
      %35 = vst.msk [vmem:[#allocation2 + $0x18] sm:$0xff] %vm31, 0.0
      %36 = vst.msk [vmem:[#allocation2 + $0x20] sm:$0xff] %vm31, 0.0
      %37 = vst.msk [vmem:[#allocation2 + $0x28] sm:$0xff] %vm31, 0.0
      %38 = vst.msk [vmem:[#allocation2 + $0x30] sm:$0xff] %vm31, 0.0
      %39 = vst.msk [vmem:[#allocation2 + $0x38] sm:$0xff] %vm31, 0.0
      %40 = vst.msk [vmem:[#allocation3] sm:$0xff] %vm31, 0.0
      %41 = vst.msk [vmem:[#allocation3 + $0x8] sm:$0xff] %vm31, 0.0
      %42 = vst.msk [vmem:[#allocation3 + $0x10] sm:$0xff] %vm31, 0.0
      %43 = vst.msk [vmem:[#allocation3 + $0x18] sm:$0xff] %vm31, 0.0
      %44 = vst.msk [vmem:[#allocation3 + $0x20] sm:$0xff] %vm31, 0.0
      %45 = vst.msk [vmem:[#allocation3 + $0x28] sm:$0xff] %vm31, 0.0
      %46 = vst.msk [vmem:[#allocation3 + $0x30] sm:$0xff] %vm31, 0.0
      %47 = vst.msk [vmem:[#allocation3 + $0x38] sm:$0xff] %vm31, 0.0
    $region17: #{tpu_custom_call.1} parent=1 // pred_fallthru
      _
    %v48 = vld [vmem:[#allocation5] sm:$0xff]
    %v49 = vld [vmem:[#allocation5 + $0x8] sm:$0xff]
    %v50 = vld [vmem:[#allocation5 + $0x10] sm:$0xff]
    %v51 = vld [vmem:[#allocation5 + $0x18] sm:$0xff]
    %v52 = vld [vmem:[#allocation5 + $0x20] sm:$0xff]
    %v53 = vld [vmem:[#allocation5 + $0x28] sm:$0xff]
    %v54 = vld [vmem:[#allocation5 + $0x30] sm:$0xff]
    %v55 = vld [vmem:[#allocation5 + $0x38] sm:$0xff]
    %s56 = sld [smem:[#allocation4]]
    %v57 = vstv %s56
    %v58 = vsub.f32 %v48, %v57
    %v59 = vsub.f32 %v49, %v57
    %v60 = vsub.f32 %v50, %v57
    %v61 = vsub.f32 %v51, %v57
    %v62 = vsub.f32 %v52, %v57
    %v63 = vsub.f32 %v53, %v57
    %v64 = vsub.f32 %v54, %v57
    %v65 = vsub.f32 %v55, %v57
    %v66 = vld [vmem:[#allocation2] sm:$0xff]
    %v67 = vld [vmem:[#allocation2 + $0x8] sm:$0xff]
    %v68 = vld [vmem:[#allocation2 + $0x10] sm:$0xff]
    %v69 = vld [vmem:[#allocation2 + $0x18] sm:$0xff]
    %v70 = vld [vmem:[#allocation2 + $0x20] sm:$0xff]
    %v71 = vld [vmem:[#allocation2 + $0x28] sm:$0xff]
    %v72 = vld [vmem:[#allocation2 + $0x30] sm:$0xff]
    %v73 = vld [vmem:[#allocation2 + $0x38] sm:$0xff]
    %v74 = vadd.f32 %v66, %v58
    %v75 = vadd.f32 %v67, %v59
    %v76 = vadd.f32 %v68, %v60
    %v77 = vadd.f32 %v69, %v61
    %v78 = vadd.f32 %v70, %v62
    %v79 = vadd.f32 %v71, %v63
    %v80 = vadd.f32 %v72, %v64
    %v81 = vadd.f32 %v73, %v65
    %vm82 = vcmask 523264
    %83 = vst.msk [vmem:[#allocation2] sm:$0xff] %vm82, %v74
    %84 = vst.msk [vmem:[#allocation2 + $0x8] sm:$0xff] %vm82, %v75
    %85 = vst.msk [vmem:[#allocation2 + $0x10] sm:$0xff] %vm82, %v76
    %86 = vst.msk [vmem:[#allocation2 + $0x18] sm:$0xff] %vm82, %v77
    %87 = vst.msk [vmem:[#allocation2 + $0x20] sm:$0xff] %vm82, %v78
    %88 = vst.msk [vmem:[#allocation2 + $0x28] sm:$0xff] %vm82, %v79
    %89 = vst.msk [vmem:[#allocation2 + $0x30] sm:$0xff] %vm82, %v80
    %90 = vst.msk [vmem:[#allocation2 + $0x38] sm:$0xff] %vm82, %v81
    %v91 = vld [vmem:[#allocation3] sm:$0xff]
    %v92 = vld [vmem:[#allocation3 + $0x8] sm:$0xff]
    %v93 = vld [vmem:[#allocation3 + $0x10] sm:$0xff]
    %v94 = vld [vmem:[#allocation3 + $0x18] sm:$0xff]
    %v95 = vld [vmem:[#allocation3 + $0x20] sm:$0xff]
    %v96 = vld [vmem:[#allocation3 + $0x28] sm:$0xff]
    %v97 = vld [vmem:[#allocation3 + $0x30] sm:$0xff]
    %v98 = vld [vmem:[#allocation3 + $0x38] sm:$0xff]
    %v99 = vmul.f32 %v58, %v58
    %v100 = vmul.f32 %v59, %v59
    %v101 = vmul.f32 %v60, %v60
    %v102 = vmul.f32 %v61, %v61
    %v103 = vmul.f32 %v62, %v62
    %v104 = vmul.f32 %v63, %v63
    %v105 = vmul.f32 %v64, %v64
    %v106 = vmul.f32 %v65, %v65
    %v107 = vadd.f32 %v91, %v99
    %v108 = vadd.f32 %v92, %v100
    %v109 = vadd.f32 %v93, %v101
    %v110 = vadd.f32 %v94, %v102
    %v111 = vadd.f32 %v95, %v103
    %v112 = vadd.f32 %v96, %v104
    %v113 = vadd.f32 %v97, %v105
    %v114 = vadd.f32 %v98, %v106
    %115 = vst.msk [vmem:[#allocation3] sm:$0xff] %vm82, %v107
    %116 = vst.msk [vmem:[#allocation3 + $0x8] sm:$0xff] %vm82, %v108
    %117 = vst.msk [vmem:[#allocation3 + $0x10] sm:$0xff] %vm82, %v109
    %118 = vst.msk [vmem:[#allocation3 + $0x18] sm:$0xff] %vm82, %v110
    %119 = vst.msk [vmem:[#allocation3 + $0x20] sm:$0xff] %vm82, %v111
    %120 = vst.msk [vmem:[#allocation3 + $0x28] sm:$0xff] %vm82, %v112
    %121 = vst.msk [vmem:[#allocation3 + $0x30] sm:$0xff] %vm82, %v113
    %122 = vst.msk [vmem:[#allocation3 + $0x38] sm:$0xff] %vm82, %v114
    // Predicated region
    $region18: #{tpu_custom_call.1} parent=1 // pred_check
      %p123 = pneg %p27
    $region19: #{tpu_custom_call.1} parent=1 // pred_check_branch
      %125 = sbr.rel (%p123) target = $region21
    $region20: #{tpu_custom_call.1} parent=1 // pred_region
      %v126 = vld [vmem:[#allocation2] sm:$0xff]
      %v127 = vld [vmem:[#allocation2 + $0x8] sm:$0xff]
      %v128 = vld [vmem:[#allocation2 + $0x10] sm:$0xff]
      %v129 = vld [vmem:[#allocation2 + $0x18] sm:$0xff]
      %v130 = vld [vmem:[#allocation2 + $0x20] sm:$0xff]
      %v131 = vld [vmem:[#allocation2 + $0x28] sm:$0xff]
      %v132 = vld [vmem:[#allocation2 + $0x30] sm:$0xff]
      %v133 = vld [vmem:[#allocation2 + $0x38] sm:$0xff]
      %v134 = vsel %vm82, %v126, 0.0
      %v135 = vsel %vm82, %v127, 0.0
      %v136 = vadd.f32 %v134, %v135
      %v137 = vsel %vm82, %v128, 0.0
      %v138 = vadd.f32 %v136, %v137
      %v139 = vsel %vm82, %v129, 0.0
      %v140 = vadd.f32 %v138, %v139
      %v141 = vsel %vm82, %v130, 0.0
      %v142 = vadd.f32 %v140, %v141
      %v143 = vsel %vm82, %v131, 0.0
      %v144 = vadd.f32 %v142, %v143
      %v145 = vsel %vm82, %v132, 0.0
      %v146 = vadd.f32 %v144, %v145
      %v147 = vsel %vm82, %v133, 0.0
      %v148 = vadd.f32 %v146, %v147
      %149 = vadd.xlane.f32.xlu0 %v148
      %v150 = vpop.xlane.xlu0 %149
      %v151 = vrot.slane %v150, 4
      %v152 = vadd.f32 %v150, %v151
      %v153 = vrot.slane %v152, 2
      %v154 = vadd.f32 %v152, %v153
      %v155 = vrot.slane %v154, 1
      %v156 = vadd.f32 %v154, %v155
      %s157 = vtos %v156
      %v158 = vld [vmem:[#allocation3] sm:$0xff]
      %v159 = vld [vmem:[#allocation3 + $0x8] sm:$0xff]
      %v160 = vld [vmem:[#allocation3 + $0x10] sm:$0xff]
      %v161 = vld [vmem:[#allocation3 + $0x18] sm:$0xff]
      %v162 = vld [vmem:[#allocation3 + $0x20] sm:$0xff]
      %v163 = vld [vmem:[#allocation3 + $0x28] sm:$0xff]
      %v164 = vld [vmem:[#allocation3 + $0x30] sm:$0xff]
      %v165 = vld [vmem:[#allocation3 + $0x38] sm:$0xff]
      %v166 = vsel %vm82, %v158, 0.0
      %v167 = vsel %vm82, %v159, 0.0
      %v168 = vadd.f32 %v166, %v167
      %v169 = vsel %vm82, %v160, 0.0
      %v170 = vadd.f32 %v168, %v169
      %v171 = vsel %vm82, %v161, 0.0
      %v172 = vadd.f32 %v170, %v171
      %v173 = vsel %vm82, %v162, 0.0
      %v174 = vadd.f32 %v172, %v173
      %v175 = vsel %vm82, %v163, 0.0
      %v176 = vadd.f32 %v174, %v175
      %v177 = vsel %vm82, %v164, 0.0
      %v178 = vadd.f32 %v176, %v177
      %v179 = vsel %vm82, %v165, 0.0
      %v180 = vadd.f32 %v178, %v179
      %181 = vadd.xlane.f32.xlu0 %v180
      %v182 = vpop.xlane.xlu0 %181
      %v183 = vrot.slane %v182, 4
      %v184 = vadd.f32 %v182, %v183
      %v185 = vrot.slane %v184, 2
      %v186 = vadd.f32 %v184, %v185
      %v187 = vrot.slane %v186, 1
      %v188 = vadd.f32 %v186, %v187
      %s189 = vtos %v188
      %s190 = smul.f32 %s157, %s157
      %v191 = vrcp.pop 4096.0
      %s192 = vtos %v191
      %s193 = smul.f32 %s190, %s192
      %s194 = ssub.f32 %s189, %s193
      %v195 = vrcp.pop 4095.0
      %s196 = vtos %v195
      %s197 = smul.f32 %s194, %s196
      %s198 = smax.f32 %s197, 0.0
      %v199 = vstv %s198
      %v200 = vrsqrt.pop %v199
      %v201 = vmul.f32 %v199, %v200
      %vm202 = vcmp.eq.f32.partialorder %v199, inf
      %v203 = vsel %vm202, %v199, %v201
      %vm204 = vcmp.eq.f32.partialorder %v199, 0.0
      %v205 = vand.u32 %v199, 2147483648
      %v206 = vsel %vm204, %v205, %v203
      %s207 = vtos %v206
      %s208 = smul.f32 %s207, -0.0012345
      %s209 = scalar_lea.smem [#allocation8], 0
      %210 = sst [smem:[%s209]] %s208
    $region21: #{tpu_custom_call.1} parent=1 // pred_fallthru
      _
    // Predicated region
    $region22: #{tpu_custom_call.1} parent=1 // pred_check
      _
    $region23: #{tpu_custom_call.1} parent=1 // pred_check_branch
      %212 = sbr.rel (0) target = $region25
    $region24: #{tpu_custom_call.1} parent=1 // pred_region
      %s214 = ssub.s32 16, 16
      %215 = vsyncadd [#allocation7], %s214
      %218 = dma.smem_to_hbm [#allocation8], 16, %s2, [#allocation7]
    $region25: #{tpu_custom_call.1} parent=1 // pred_fallthru
      _
    // Predicated region
    $region26: #{tpu_custom_call.1} parent=1 // pred_check
      _
    $region27: #{tpu_custom_call.1} parent=1 // pred_check_branch
      %220 = sbr.rel (0) target = $region29
    $region28: #{tpu_custom_call.1} parent=1 // pred_region
      %221 = dma.done [#allocation7], 16
    $region29: #{tpu_custom_call.1} parent=1 // pred_fallthru
      _
    %222 = sfence
    %223 = vsyncpa [#allocation6], 1
    %224 = vsyncpa [#allocation7], 1

</llo_original>
